<compile_context>
chip_gen: v6e
topology: v6e:2x2x1
jax: 0.10.0
libtpu: 0.0.40
codegen_flags: <defaults>
</compile_context>

<pallas_src>
import functools

import jax
import jax.numpy as jnp
from jax.experimental import pallas as pl
from jax.experimental.pallas import tpu as pltpu

_LANES = 128

# Packed parameter layout (flat f32, 37 entries):
#   [ 0: 8)  w1  (2,4) row-major, stored as (in, out) == torch W^T
#   [ 8:12)  b1  (4,)
#   [12:28)  w2  (4,4) row-major
#   [28:32)  b2  (4,)
#   [32:36)  wd  (4,)   = w3[:,0] - w3[:,1]   (fc3 fused with 2-class softmax)
#   [36:37)  bd  (1,)   = b3[0]  - b3[1]
_W1, _B1, _W2, _B2, _WD, _BD = 0, 8, 12, 28, 32, 36


def _mlp_kernel(p_ref, x_ref, o_ref):
    """p_ref: SMEM (37,) f32 packed params; x_ref/o_ref: VMEM (2, TR, 128)."""
    f32 = jnp.float32
    x0 = x_ref[0].astype(f32)          # (TR, 128) dense slab
    x1 = x_ref[1].astype(f32)

    # fc1 (2 -> 4) + sigmoid: scalar-broadcast FMAs on VPU, sigmoid on EUP.
    h1 = [
        jax.nn.sigmoid(p_ref[_W1 + 0 * 4 + j] * x0
                       + p_ref[_W1 + 1 * 4 + j] * x1
                       + p_ref[_B1 + j])
        for j in range(4)
    ]

    # fc2 (4 -> 4) + sigmoid
    h2 = []
    for j in range(4):
        z = p_ref[_B2 + j] + p_ref[_W2 + 0 * 4 + j] * h1[0]
        for i in range(1, 4):
            z = z + p_ref[_W2 + i * 4 + j] * h1[i]
        h2.append(jax.nn.sigmoid(z))

    # fc3 fused with 2-class softmax:
    #   softmax([a, b]) = [sigmoid(a - b), 1 - sigmoid(a - b)]
    #   a - b = bd + sum_i wd_i * h2[i]
    d = p_ref[_BD] + p_ref[_WD + 0] * h2[0]
    for i in range(1, 4):
        d = d + p_ref[_WD + i] * h2[i]
    p0 = jax.nn.sigmoid(d)

    o_ref[0] = p0.astype(o_ref.dtype)            # unmasked (TR,128) vst
    o_ref[1] = (1.0 - p0).astype(o_ref.dtype)


def _pack_params(params):
    w3 = params["w3"].astype(jnp.float32)        # (4, 2)
    b3 = params["b3"].reshape(-1).astype(jnp.float32)  # (2,)
    wd = w3[:, 0] - w3[:, 1]                     # (4,)
    bd = (b3[0] - b3[1]).reshape(1)              # (1,)
    return jnp.concatenate([
        params["w1"].reshape(-1), params["b1"].reshape(-1),
        params["w2"].reshape(-1), params["b2"].reshape(-1),
        wd, bd,
    ]).astype(jnp.float32)


@functools.partial(jax.jit, static_argnames=("block_rows",))
def mlp_forward(x, params, *, block_rows=1024):
    """x: (B, 2) float -> (B, 2) float32 softmax probabilities.

    block_rows = sublane rows of 128 batch elements per grid step
    (multiple of 8; default 1024 rows => 1 MiB input tile / step).
    """
    assert block_rows % 8 == 0, "block_rows must be a multiple of 8 sublanes"
    B = x.shape[0]

    rows_needed = max(1, pl.cdiv(B, _LANES))
    tr = min(block_rows, pl.cdiv(rows_needed, 8) * 8)   # shrink for small B
    n_blocks = pl.cdiv(rows_needed, tr)
    r_pad = n_blocks * tr
    b_pad = r_pad * _LANES

    packed = _pack_params(params)

    # Batch on (sublane, lane): (B,2) -> pad -> (2, b_pad) -> (2, R, 128).
    xt = jnp.pad(x.astype(jnp.float32), ((0, b_pad - B), (0, 0)))
    xt = xt.T.reshape(2, r_pad, _LANES)

    out = pl.pallas_call(
        _mlp_kernel,
        out_shape=jax.ShapeDtypeStruct((2, r_pad, _LANES), jnp.float32),
        grid_spec=pltpu.PrefetchScalarGridSpec(
            num_scalar_prefetch=1,                 # packed params -> SMEM, resident
            grid=(n_blocks,),
            in_specs=[pl.BlockSpec((2, tr, _LANES), lambda i, p: (0, i, 0))],
            out_specs=pl.BlockSpec((2, tr, _LANES), lambda i, p: (0, i, 0)),
        ),
        compiler_params=pltpu.CompilerParams(
            dimension_semantics=("parallel",),     # megacore sharding on v7x
            vmem_limit_bytes=32 * 1024 * 1024,     # explicit; safe on v5e/v6e/v7x
        ),
    )(packed, xt)

    return out.reshape(2, b_pad)[:, :B].T


def init_params(key):
    """Deterministic init matching nn.Linear shapes (weights stored as (in, out) == torch W^T)."""
    ks = jax.random.split(key, 6)

    def lin(kw, kb, fan_in, fan_out):
        bound = 1.0 / jnp.sqrt(fan_in)
        w = jax.random.uniform(kw, (fan_in, fan_out), jnp.float32, -bound, bound)
        b = jax.random.uniform(kb, (1, fan_out), jnp.float32, -bound, bound)
        return w, b

    w1, b1 = lin(ks[0], ks[1], 2, 4)
    w2, b2 = lin(ks[2], ks[3], 4, 4)
    w3, b3 = lin(ks[4], ks[5], 4, 2)
    return {"w1": w1, "b1": b1, "w2": w2, "b2": b2, "w3": w3, "b3": b3}


def _reference(x, p):
    h1 = jax.nn.sigmoid(x @ p["w1"] + p["b1"])
    h2 = jax.nn.sigmoid(h1 @ p["w2"] + p["b2"])
    logits = h2 @ p["w3"] + p["b3"]
    return jax.nn.softmax(logits, axis=1)


if __name__ == "__main__":
    key = jax.random.PRNGKey(0)
    k_x, k_x2, k_p = jax.random.split(key, 3)
    params = init_params(k_p)

    # Small test (single tile, auto-shrunk to TR=8).
    B = 8
    x = jax.random.normal(k_x, (B, 2), jnp.float32)
    out = jax.block_until_ready(mlp_forward(x, params))
    ref = _reference(x, params)
    assert out.shape == (B, 2)
    assert jnp.allclose(out, ref, atol=1e-5, rtol=1e-5)
    assert jnp.allclose(jnp.sum(out, axis=1), jnp.ones((B,)), atol=1e-5)

    # Multi-tile test: exercises the batch grid, padding and slicing
    # (rows_needed = 24, TR = 8 -> grid of 3 steps).
    B2 = 3000
    x2 = jax.random.normal(k_x2, (B2, 2), jnp.float32)
    out2 = jax.block_until_ready(mlp_forward(x2, params, block_rows=8))
    ref2 = _reference(x2, params)
    assert out2.shape == (B2, 2)
    assert jnp.allclose(out2, ref2, atol=1e-5, rtol=1e-5)

    print("KERNEL_OK")
</pallas_src>

<mosaic_0001>
module attributes {stable_mosaic.version = 11 : i64} {
  func.func @_mlp_kernel(%arg0: i32, %arg1: memref<37xf32, #tpu.memory_space<smem>>, %arg2: memref<2x8x128xf32, #tpu.memory_space<vmem>>, %arg3: memref<2x8x128xf32, #tpu.memory_space<vmem>>) attributes {dimension_semantics = [#tpu.dimension_semantics<parallel>], iteration_bounds = array<i64: 1>, scalar_prefetch = 1 : i64, scratch_operands = 0 : i64, tpu.core_type = #tpu.core_type<tc>, window_params = [{transform_indices = @transform_0, window_bounds = array<i64: 2, 8, 128>}, {transform_indices = @transform_1, window_bounds = array<i64: 2, 8, 128>}]} {
    %c0 = arith.constant 0 : index
    %c0_0 = arith.constant 0 : index
    %c0_1 = arith.constant 0 : index
    %0 = vector.load %arg2[%c0, %c0_0, %c0_1] : memref<2x8x128xf32, #tpu.memory_space<vmem>>, vector<1x8x128xf32>
    %1 = vector.shape_cast %0 : vector<1x8x128xf32> to vector<8x128xf32>
    %c1 = arith.constant 1 : index
    %c0_2 = arith.constant 0 : index
    %c0_3 = arith.constant 0 : index
    %2 = vector.load %arg2[%c1, %c0_2, %c0_3] : memref<2x8x128xf32, #tpu.memory_space<vmem>>, vector<1x8x128xf32>
    %3 = vector.shape_cast %2 : vector<1x8x128xf32> to vector<8x128xf32>
    %c0_4 = arith.constant 0 : index
    %4 = memref.load %arg1[%c0_4] : memref<37xf32, #tpu.memory_space<smem>>
    %5 = vector.broadcast %4 : f32 to vector<8x128xf32>
    %6 = arith.mulf %5, %1 : vector<8x128xf32>
    %c4 = arith.constant 4 : index
    %7 = memref.load %arg1[%c4] : memref<37xf32, #tpu.memory_space<smem>>
    %8 = vector.broadcast %7 : f32 to vector<8x128xf32>
    %9 = arith.mulf %8, %3 : vector<8x128xf32>
    %10 = arith.addf %6, %9 : vector<8x128xf32>
    %c8 = arith.constant 8 : index
    %11 = memref.load %arg1[%c8] : memref<37xf32, #tpu.memory_space<smem>>
    %12 = vector.broadcast %11 : f32 to vector<8x128xf32>
    %13 = arith.addf %10, %12 : vector<8x128xf32>
    %14 = arith.negf %13 : vector<8x128xf32>
    %15 = math.exp %14 : vector<8x128xf32>
    %cst = arith.constant 1.000000e+00 : f32
    %16 = vector.broadcast %cst : f32 to vector<8x128xf32>
    %17 = arith.addf %16, %15 : vector<8x128xf32>
    %18 = arith.divf %16, %17 : vector<8x128xf32>
    %c1_5 = arith.constant 1 : index
    %19 = memref.load %arg1[%c1_5] : memref<37xf32, #tpu.memory_space<smem>>
    %20 = vector.broadcast %19 : f32 to vector<8x128xf32>
    %21 = arith.mulf %20, %1 : vector<8x128xf32>
    %c5 = arith.constant 5 : index
    %22 = memref.load %arg1[%c5] : memref<37xf32, #tpu.memory_space<smem>>
    %23 = vector.broadcast %22 : f32 to vector<8x128xf32>
    %24 = arith.mulf %23, %3 : vector<8x128xf32>
    %25 = arith.addf %21, %24 : vector<8x128xf32>
    %c9 = arith.constant 9 : index
    %26 = memref.load %arg1[%c9] : memref<37xf32, #tpu.memory_space<smem>>
    %27 = vector.broadcast %26 : f32 to vector<8x128xf32>
    %28 = arith.addf %25, %27 : vector<8x128xf32>
    %29 = arith.negf %28 : vector<8x128xf32>
    %30 = math.exp %29 : vector<8x128xf32>
    %cst_6 = arith.constant 1.000000e+00 : f32
    %31 = vector.broadcast %cst_6 : f32 to vector<8x128xf32>
    %32 = arith.addf %31, %30 : vector<8x128xf32>
    %33 = arith.divf %31, %32 : vector<8x128xf32>
    %c2 = arith.constant 2 : index
    %34 = memref.load %arg1[%c2] : memref<37xf32, #tpu.memory_space<smem>>
    %35 = vector.broadcast %34 : f32 to vector<8x128xf32>
    %36 = arith.mulf %35, %1 : vector<8x128xf32>
    %c6 = arith.constant 6 : index
    %37 = memref.load %arg1[%c6] : memref<37xf32, #tpu.memory_space<smem>>
    %38 = vector.broadcast %37 : f32 to vector<8x128xf32>
    %39 = arith.mulf %38, %3 : vector<8x128xf32>
    %40 = arith.addf %36, %39 : vector<8x128xf32>
    %c10 = arith.constant 10 : index
    %41 = memref.load %arg1[%c10] : memref<37xf32, #tpu.memory_space<smem>>
    %42 = vector.broadcast %41 : f32 to vector<8x128xf32>
    %43 = arith.addf %40, %42 : vector<8x128xf32>
    %44 = arith.negf %43 : vector<8x128xf32>
    %45 = math.exp %44 : vector<8x128xf32>
    %cst_7 = arith.constant 1.000000e+00 : f32
    %46 = vector.broadcast %cst_7 : f32 to vector<8x128xf32>
    %47 = arith.addf %46, %45 : vector<8x128xf32>
    %48 = arith.divf %46, %47 : vector<8x128xf32>
    %c3 = arith.constant 3 : index
    %49 = memref.load %arg1[%c3] : memref<37xf32, #tpu.memory_space<smem>>
    %50 = vector.broadcast %49 : f32 to vector<8x128xf32>
    %51 = arith.mulf %50, %1 : vector<8x128xf32>
    %c7 = arith.constant 7 : index
    %52 = memref.load %arg1[%c7] : memref<37xf32, #tpu.memory_space<smem>>
    %53 = vector.broadcast %52 : f32 to vector<8x128xf32>
    %54 = arith.mulf %53, %3 : vector<8x128xf32>
    %55 = arith.addf %51, %54 : vector<8x128xf32>
    %c11 = arith.constant 11 : index
    %56 = memref.load %arg1[%c11] : memref<37xf32, #tpu.memory_space<smem>>
    %57 = vector.broadcast %56 : f32 to vector<8x128xf32>
    %58 = arith.addf %55, %57 : vector<8x128xf32>
    %59 = arith.negf %58 : vector<8x128xf32>
    %60 = math.exp %59 : vector<8x128xf32>
    %cst_8 = arith.constant 1.000000e+00 : f32
    %61 = vector.broadcast %cst_8 : f32 to vector<8x128xf32>
    %62 = arith.addf %61, %60 : vector<8x128xf32>
    %63 = arith.divf %61, %62 : vector<8x128xf32>
    %c28 = arith.constant 28 : index
    %64 = memref.load %arg1[%c28] : memref<37xf32, #tpu.memory_space<smem>>
    %c12 = arith.constant 12 : index
    %65 = memref.load %arg1[%c12] : memref<37xf32, #tpu.memory_space<smem>>
    %66 = vector.broadcast %65 : f32 to vector<8x128xf32>
    %67 = arith.mulf %66, %18 : vector<8x128xf32>
    %68 = vector.broadcast %64 : f32 to vector<8x128xf32>
    %69 = arith.addf %68, %67 : vector<8x128xf32>
    %c16 = arith.constant 16 : index
    %70 = memref.load %arg1[%c16] : memref<37xf32, #tpu.memory_space<smem>>
    %71 = vector.broadcast %70 : f32 to vector<8x128xf32>
    %72 = arith.mulf %71, %33 : vector<8x128xf32>
    %73 = arith.addf %69, %72 : vector<8x128xf32>
    %c20 = arith.constant 20 : index
    %74 = memref.load %arg1[%c20] : memref<37xf32, #tpu.memory_space<smem>>
    %75 = vector.broadcast %74 : f32 to vector<8x128xf32>
    %76 = arith.mulf %75, %48 : vector<8x128xf32>
    %77 = arith.addf %73, %76 : vector<8x128xf32>
    %c24 = arith.constant 24 : index
    %78 = memref.load %arg1[%c24] : memref<37xf32, #tpu.memory_space<smem>>
    %79 = vector.broadcast %78 : f32 to vector<8x128xf32>
    %80 = arith.mulf %79, %63 : vector<8x128xf32>
    %81 = arith.addf %77, %80 : vector<8x128xf32>
    %82 = arith.negf %81 : vector<8x128xf32>
    %83 = math.exp %82 : vector<8x128xf32>
    %cst_9 = arith.constant 1.000000e+00 : f32
    %84 = vector.broadcast %cst_9 : f32 to vector<8x128xf32>
    %85 = arith.addf %84, %83 : vector<8x128xf32>
    %86 = arith.divf %84, %85 : vector<8x128xf32>
    %c29 = arith.constant 29 : index
    %87 = memref.load %arg1[%c29] : memref<37xf32, #tpu.memory_space<smem>>
    %c13 = arith.constant 13 : index
    %88 = memref.load %arg1[%c13] : memref<37xf32, #tpu.memory_space<smem>>
    %89 = vector.broadcast %88 : f32 to vector<8x128xf32>
    %90 = arith.mulf %89, %18 : vector<8x128xf32>
    %91 = vector.broadcast %87 : f32 to vector<8x128xf32>
    %92 = arith.addf %91, %90 : vector<8x128xf32>
    %c17 = arith.constant 17 : index
    %93 = memref.load %arg1[%c17] : memref<37xf32, #tpu.memory_space<smem>>
    %94 = vector.broadcast %93 : f32 to vector<8x128xf32>
    %95 = arith.mulf %94, %33 : vector<8x128xf32>
    %96 = arith.addf %92, %95 : vector<8x128xf32>
    %c21 = arith.constant 21 : index
    %97 = memref.load %arg1[%c21] : memref<37xf32, #tpu.memory_space<smem>>
    %98 = vector.broadcast %97 : f32 to vector<8x128xf32>
    %99 = arith.mulf %98, %48 : vector<8x128xf32>
    %100 = arith.addf %96, %99 : vector<8x128xf32>
    %c25 = arith.constant 25 : index
    %101 = memref.load %arg1[%c25] : memref<37xf32, #tpu.memory_space<smem>>
    %102 = vector.broadcast %101 : f32 to vector<8x128xf32>
    %103 = arith.mulf %102, %63 : vector<8x128xf32>
    %104 = arith.addf %100, %103 : vector<8x128xf32>
    %105 = arith.negf %104 : vector<8x128xf32>
    %106 = math.exp %105 : vector<8x128xf32>
    %cst_10 = arith.constant 1.000000e+00 : f32
    %107 = vector.broadcast %cst_10 : f32 to vector<8x128xf32>
    %108 = arith.addf %107, %106 : vector<8x128xf32>
    %109 = arith.divf %107, %108 : vector<8x128xf32>
    %c30 = arith.constant 30 : index
    %110 = memref.load %arg1[%c30] : memref<37xf32, #tpu.memory_space<smem>>
    %c14 = arith.constant 14 : index
    %111 = memref.load %arg1[%c14] : memref<37xf32, #tpu.memory_space<smem>>
    %112 = vector.broadcast %111 : f32 to vector<8x128xf32>
    %113 = arith.mulf %112, %18 : vector<8x128xf32>
    %114 = vector.broadcast %110 : f32 to vector<8x128xf32>
    %115 = arith.addf %114, %113 : vector<8x128xf32>
    %c18 = arith.constant 18 : index
    %116 = memref.load %arg1[%c18] : memref<37xf32, #tpu.memory_space<smem>>
    %117 = vector.broadcast %116 : f32 to vector<8x128xf32>
    %118 = arith.mulf %117, %33 : vector<8x128xf32>
    %119 = arith.addf %115, %118 : vector<8x128xf32>
    %c22 = arith.constant 22 : index
    %120 = memref.load %arg1[%c22] : memref<37xf32, #tpu.memory_space<smem>>
    %121 = vector.broadcast %120 : f32 to vector<8x128xf32>
    %122 = arith.mulf %121, %48 : vector<8x128xf32>
    %123 = arith.addf %119, %122 : vector<8x128xf32>
    %c26 = arith.constant 26 : index
    %124 = memref.load %arg1[%c26] : memref<37xf32, #tpu.memory_space<smem>>
    %125 = vector.broadcast %124 : f32 to vector<8x128xf32>
    %126 = arith.mulf %125, %63 : vector<8x128xf32>
    %127 = arith.addf %123, %126 : vector<8x128xf32>
    %128 = arith.negf %127 : vector<8x128xf32>
    %129 = math.exp %128 : vector<8x128xf32>
    %cst_11 = arith.constant 1.000000e+00 : f32
    %130 = vector.broadcast %cst_11 : f32 to vector<8x128xf32>
    %131 = arith.addf %130, %129 : vector<8x128xf32>
    %132 = arith.divf %130, %131 : vector<8x128xf32>
    %c31 = arith.constant 31 : index
    %133 = memref.load %arg1[%c31] : memref<37xf32, #tpu.memory_space<smem>>
    %c15 = arith.constant 15 : index
    %134 = memref.load %arg1[%c15] : memref<37xf32, #tpu.memory_space<smem>>
    %135 = vector.broadcast %134 : f32 to vector<8x128xf32>
    %136 = arith.mulf %135, %18 : vector<8x128xf32>
    %137 = vector.broadcast %133 : f32 to vector<8x128xf32>
    %138 = arith.addf %137, %136 : vector<8x128xf32>
    %c19 = arith.constant 19 : index
    %139 = memref.load %arg1[%c19] : memref<37xf32, #tpu.memory_space<smem>>
    %140 = vector.broadcast %139 : f32 to vector<8x128xf32>
    %141 = arith.mulf %140, %33 : vector<8x128xf32>
    %142 = arith.addf %138, %141 : vector<8x128xf32>
    %c23 = arith.constant 23 : index
    %143 = memref.load %arg1[%c23] : memref<37xf32, #tpu.memory_space<smem>>
    %144 = vector.broadcast %143 : f32 to vector<8x128xf32>
    %145 = arith.mulf %144, %48 : vector<8x128xf32>
    %146 = arith.addf %142, %145 : vector<8x128xf32>
    %c27 = arith.constant 27 : index
    %147 = memref.load %arg1[%c27] : memref<37xf32, #tpu.memory_space<smem>>
    %148 = vector.broadcast %147 : f32 to vector<8x128xf32>
    %149 = arith.mulf %148, %63 : vector<8x128xf32>
    %150 = arith.addf %146, %149 : vector<8x128xf32>
    %151 = arith.negf %150 : vector<8x128xf32>
    %152 = math.exp %151 : vector<8x128xf32>
    %cst_12 = arith.constant 1.000000e+00 : f32
    %153 = vector.broadcast %cst_12 : f32 to vector<8x128xf32>
    %154 = arith.addf %153, %152 : vector<8x128xf32>
    %155 = arith.divf %153, %154 : vector<8x128xf32>
    %c36 = arith.constant 36 : index
    %156 = memref.load %arg1[%c36] : memref<37xf32, #tpu.memory_space<smem>>
    %c32 = arith.constant 32 : index
    %157 = memref.load %arg1[%c32] : memref<37xf32, #tpu.memory_space<smem>>
    %158 = vector.broadcast %157 : f32 to vector<8x128xf32>
    %159 = arith.mulf %158, %86 : vector<8x128xf32>
    %160 = vector.broadcast %156 : f32 to vector<8x128xf32>
    %161 = arith.addf %160, %159 : vector<8x128xf32>
    %c33 = arith.constant 33 : index
    %162 = memref.load %arg1[%c33] : memref<37xf32, #tpu.memory_space<smem>>
    %163 = vector.broadcast %162 : f32 to vector<8x128xf32>
    %164 = arith.mulf %163, %109 : vector<8x128xf32>
    %165 = arith.addf %161, %164 : vector<8x128xf32>
    %c34 = arith.constant 34 : index
    %166 = memref.load %arg1[%c34] : memref<37xf32, #tpu.memory_space<smem>>
    %167 = vector.broadcast %166 : f32 to vector<8x128xf32>
    %168 = arith.mulf %167, %132 : vector<8x128xf32>
    %169 = arith.addf %165, %168 : vector<8x128xf32>
    %c35 = arith.constant 35 : index
    %170 = memref.load %arg1[%c35] : memref<37xf32, #tpu.memory_space<smem>>
    %171 = vector.broadcast %170 : f32 to vector<8x128xf32>
    %172 = arith.mulf %171, %155 : vector<8x128xf32>
    %173 = arith.addf %169, %172 : vector<8x128xf32>
    %174 = arith.negf %173 : vector<8x128xf32>
    %175 = math.exp %174 : vector<8x128xf32>
    %cst_13 = arith.constant 1.000000e+00 : f32
    %176 = vector.broadcast %cst_13 : f32 to vector<8x128xf32>
    %177 = arith.addf %176, %175 : vector<8x128xf32>
    %178 = arith.divf %176, %177 : vector<8x128xf32>
    %c0_14 = arith.constant 0 : index
    %c0_15 = arith.constant 0 : index
    %c0_16 = arith.constant 0 : index
    %179 = vector.load %arg3[%c0_14, %c0_15, %c0_16] : memref<2x8x128xf32, #tpu.memory_space<vmem>>, vector<1x8x128xf32>
    %180 = vector.shape_cast %179 : vector<1x8x128xf32> to vector<8x128xf32>
    %181 = vector.shape_cast %178 : vector<8x128xf32> to vector<1x8x128xf32>
    tpu.vector_store %arg3[%c0_14, %c0_15, %c0_16], %181 {strides = array<i32>} : memref<2x8x128xf32, #tpu.memory_space<vmem>>, vector<1x8x128xf32>,
    %cst_17 = arith.constant 1.000000e+00 : f32
    %182 = vector.broadcast %cst_17 : f32 to vector<8x128xf32>
    %183 = arith.subf %182, %178 : vector<8x128xf32>
    %c1_18 = arith.constant 1 : index
    %c0_19 = arith.constant 0 : index
    %c0_20 = arith.constant 0 : index
    %184 = vector.load %arg3[%c1_18, %c0_19, %c0_20] : memref<2x8x128xf32, #tpu.memory_space<vmem>>, vector<1x8x128xf32>
    %185 = vector.shape_cast %184 : vector<1x8x128xf32> to vector<8x128xf32>
    %186 = vector.shape_cast %183 : vector<8x128xf32> to vector<1x8x128xf32>
    tpu.vector_store %arg3[%c1_18, %c0_19, %c0_20], %186 {strides = array<i32>} : memref<2x8x128xf32, #tpu.memory_space<vmem>>, vector<1x8x128xf32>,
    return
  }
  func.func @transform_0(%arg0: i32, %arg1: memref<37xf32, #tpu.memory_space<smem>>) -> (i32, i32, i32) {
    %c0_i32 = arith.constant 0 : i32
    %c0_i32_0 = arith.constant 0 : i32
    %c0_i32_1 = arith.constant 0 : i32
    return %c0_i32, %arg0, %c0_i32_0 : i32, i32, i32
  }
  func.func @transform_1(%arg0: i32, %arg1: memref<37xf32, #tpu.memory_space<smem>>) -> (i32, i32, i32) {
    %c0_i32 = arith.constant 0 : i32
    %c0_i32_0 = arith.constant 0 : i32
    %c0_i32_1 = arith.constant 0 : i32
    return %c0_i32, %arg0, %c0_i32_0 : i32, i32, i32
  }
}

</mosaic_0001>

<llo_original>
// kernel: mlp_forward.1
$region0: #{mlp_forward.1}
  #allocation0 [shape = 'u32[]', space=smem, size = 0x4, offset = 0x4, fixed_abs, tag = 'smem constant byte address 0x4 - core index']
  #allocation1 [shape = 'u32[144,128]{1,0:T(1,128)}', space=vmem, size = 0x12000, scoped, tag = 'internal scratch']
  #allocation2 [shape = 's32[1]{0}', space=sflag, size = 0x4, scoped, tag = 'scoped memory for mlp_forward.1']
  #allocation3 [shape = 'u8[512]{0}', space=smem, size = 0x200, scoped, tag = 'prefetched SMEM operand 0']
  %s0 = inlined_call_operand.vmem [shape: f32[37], index: 0, kind: input, shape index: {}]
  %s1 = inlined_call_operand.vmem [shape: f32[2,8,128], index: 1, kind: input, shape index: {}]
  %s2 = inlined_call_operand.vmem [shape: f32[2,8,128], index: 2, kind: output, shape index: {}]
  %s3 = sld [smem:[#allocation0]]
  $region14: #{mlp_forward.1} parent=0
    _
  %s5 = ssub.s32 1, %s3
  %s6 = scalar_select 0, %s5, %s3
  %s7 = sshll.u32 %s0, 4
  %s8 = int_to_ptr.vmem [resolvable:$true] %s7
  %10 = dma.vmem_to_smem %s8, 16, [#allocation3], [#allocation2]
  %11 = dma.done [#allocation2], 16
  %12 = sfence
  // Predicated region
  $region2: #{mlp_forward.1} parent=0 // pred_check
    _
  $region3: #{mlp_forward.1} parent=0 // pred_check_branch
    %14 = sbr.rel (0) target = $region5
  $region4: #{mlp_forward.1} parent=0 // pred_region
    _
  $region5: #{mlp_forward.1} parent=0 // pred_fallthru
    _
  %v15 = vld [vmem:[%s1] sm:$0xff]
  %s16 = scalar_lea.vmem %s1, 8
  %v17 = vld [vmem:[%s16] sm:$0xff]
  %s18 = sld [smem:[#allocation3]]
  %v19 = vstv %s18
  %v20 = vmul.f32 %v19, %v15
  %s21 = sld [smem:[#allocation3 + $0x4]]
  %v22 = vstv %s21
  %v23 = vmul.f32 %v22, %v17
  %v24 = vadd.f32 %v20, %v23
  %s25 = sld [smem:[#allocation3 + $0x8]]
  %v26 = vstv %s25
  %v27 = vadd.f32 %v24, %v26
  %v28 = vxor.u32 %v27, 2147483648
  %v29 = vmul.f32 %v28, 1.442695
  %v30 = vpow.pop %v29
  %v31 = vadd.f32 %v30, 1.0
  %v32 = vrcp.pop %v31
  %v33 = vmul.f32 1.0, %v32
  %s34 = sld [smem:[#allocation3 + $0x1]]
  %v35 = vstv %s34
  %v36 = vmul.f32 %v35, %v15
  %s37 = sld [smem:[#allocation3 + $0x5]]
  %v38 = vstv %s37
  %v39 = vmul.f32 %v38, %v17
  %v40 = vadd.f32 %v36, %v39
  %s41 = sld [smem:[#allocation3 + $0x9]]
  %v42 = vstv %s41
  %v43 = vadd.f32 %v40, %v42
  %v44 = vxor.u32 %v43, 2147483648
  %v45 = vmul.f32 %v44, 1.442695
  %v46 = vpow.pop %v45
  %v47 = vadd.f32 %v46, 1.0
  %v48 = vrcp.pop %v47
  %v49 = vmul.f32 1.0, %v48
  %s50 = sld [smem:[#allocation3 + $0x2]]
  %v51 = vstv %s50
  %v52 = vmul.f32 %v51, %v15
  %s53 = sld [smem:[#allocation3 + $0x6]]
  %v54 = vstv %s53
  %v55 = vmul.f32 %v54, %v17
  %v56 = vadd.f32 %v52, %v55
  %s57 = sld [smem:[#allocation3 + $0xa]]
  %v58 = vstv %s57
  %v59 = vadd.f32 %v56, %v58
  %v60 = vxor.u32 %v59, 2147483648
  %v61 = vmul.f32 %v60, 1.442695
  %v62 = vpow.pop %v61
  %v63 = vadd.f32 %v62, 1.0
  %v64 = vrcp.pop %v63
  %v65 = vmul.f32 1.0, %v64
  %s66 = sld [smem:[#allocation3 + $0x3]]
  %v67 = vstv %s66
  %v68 = vmul.f32 %v67, %v15
  %s69 = sld [smem:[#allocation3 + $0x7]]
  %v70 = vstv %s69
  %v71 = vmul.f32 %v70, %v17
  %v72 = vadd.f32 %v68, %v71
  %s73 = sld [smem:[#allocation3 + $0xb]]
  %v74 = vstv %s73
  %v75 = vadd.f32 %v72, %v74
  %v76 = vxor.u32 %v75, 2147483648
  %v77 = vmul.f32 %v76, 1.442695
  %v78 = vpow.pop %v77
  %v79 = vadd.f32 %v78, 1.0
  %v80 = vrcp.pop %v79
  %v81 = vmul.f32 1.0, %v80
  %s82 = sld [smem:[#allocation3 + $0x1c]]
  %s83 = sld [smem:[#allocation3 + $0xc]]
  %v84 = vstv %s83
  %v85 = vmul.f32 %v84, %v33
  %v86 = vstv %s82
  %v87 = vadd.f32 %v86, %v85
  %s88 = sld [smem:[#allocation3 + $0x10]]
  %v89 = vstv %s88
  %v90 = vmul.f32 %v89, %v49
  %v91 = vadd.f32 %v87, %v90
  %s92 = sld [smem:[#allocation3 + $0x14]]
  %v93 = vstv %s92
  %v94 = vmul.f32 %v93, %v65
  %v95 = vadd.f32 %v91, %v94
  %s96 = sld [smem:[#allocation3 + $0x18]]
  %v97 = vstv %s96
  %v98 = vmul.f32 %v97, %v81
  %v99 = vadd.f32 %v95, %v98
  %v100 = vxor.u32 %v99, 2147483648
  %v101 = vmul.f32 %v100, 1.442695
  %v102 = vpow.pop %v101
  %v103 = vadd.f32 %v102, 1.0
  %v104 = vrcp.pop %v103
  %v105 = vmul.f32 1.0, %v104
  %s106 = sld [smem:[#allocation3 + $0x1d]]
  %s107 = sld [smem:[#allocation3 + $0xd]]
  %v108 = vstv %s107
  %v109 = vmul.f32 %v108, %v33
  %v110 = vstv %s106
  %v111 = vadd.f32 %v110, %v109
  %s112 = sld [smem:[#allocation3 + $0x11]]
  %v113 = vstv %s112
  %v114 = vmul.f32 %v113, %v49
  %v115 = vadd.f32 %v111, %v114
  %s116 = sld [smem:[#allocation3 + $0x15]]
  %v117 = vstv %s116
  %v118 = vmul.f32 %v117, %v65
  %v119 = vadd.f32 %v115, %v118
  %s120 = sld [smem:[#allocation3 + $0x19]]
  %v121 = vstv %s120
  %v122 = vmul.f32 %v121, %v81
  %v123 = vadd.f32 %v119, %v122
  %v124 = vxor.u32 %v123, 2147483648
  %v125 = vmul.f32 %v124, 1.442695
  %v126 = vpow.pop %v125
  %v127 = vadd.f32 %v126, 1.0
  %v128 = vrcp.pop %v127
  %v129 = vmul.f32 1.0, %v128
  %s130 = sld [smem:[#allocation3 + $0x1e]]
  %s131 = sld [smem:[#allocation3 + $0xe]]
  %v132 = vstv %s131
  %v133 = vmul.f32 %v132, %v33
  %v134 = vstv %s130
  %v135 = vadd.f32 %v134, %v133
  %s136 = sld [smem:[#allocation3 + $0x12]]
  %v137 = vstv %s136
  %v138 = vmul.f32 %v137, %v49
  %v139 = vadd.f32 %v135, %v138
  %s140 = sld [smem:[#allocation3 + $0x16]]
  %v141 = vstv %s140
  %v142 = vmul.f32 %v141, %v65
  %v143 = vadd.f32 %v139, %v142
  %s144 = sld [smem:[#allocation3 + $0x1a]]
  %v145 = vstv %s144
  %v146 = vmul.f32 %v145, %v81
  %v147 = vadd.f32 %v143, %v146
  %v148 = vxor.u32 %v147, 2147483648
  %v149 = vmul.f32 %v148, 1.442695
  %v150 = vpow.pop %v149
  %v151 = vadd.f32 %v150, 1.0
  %v152 = vrcp.pop %v151
  %v153 = vmul.f32 1.0, %v152
  %s154 = sld [smem:[#allocation3 + $0x1f]]
  %s155 = sld [smem:[#allocation3 + $0xf]]
  %v156 = vstv %s155
  %v157 = vmul.f32 %v156, %v33
  %v158 = vstv %s154
  %v159 = vadd.f32 %v158, %v157
  %s160 = sld [smem:[#allocation3 + $0x13]]
  %v161 = vstv %s160
  %v162 = vmul.f32 %v161, %v49
  %v163 = vadd.f32 %v159, %v162
  %s164 = sld [smem:[#allocation3 + $0x17]]
  %v165 = vstv %s164
  %v166 = vmul.f32 %v165, %v65
  %v167 = vadd.f32 %v163, %v166
  %s168 = sld [smem:[#allocation3 + $0x1b]]
  %v169 = vstv %s168
  %v170 = vmul.f32 %v169, %v81
  %v171 = vadd.f32 %v167, %v170
  %v172 = vxor.u32 %v171, 2147483648
  %v173 = vmul.f32 %v172, 1.442695
  %v174 = vpow.pop %v173
  %v175 = vadd.f32 %v174, 1.0
  %v176 = vrcp.pop %v175
  %v177 = vmul.f32 1.0, %v176
  %s178 = sld [smem:[#allocation3 + $0x24]]
  %s179 = sld [smem:[#allocation3 + $0x20]]
  %v180 = vstv %s179
  %v181 = vmul.f32 %v180, %v105
  %v182 = vstv %s178
  %v183 = vadd.f32 %v182, %v181
  %s184 = sld [smem:[#allocation3 + $0x21]]
  %v185 = vstv %s184
  %v186 = vmul.f32 %v185, %v129
  %v187 = vadd.f32 %v183, %v186
  %s188 = sld [smem:[#allocation3 + $0x22]]
  %v189 = vstv %s188
  %v190 = vmul.f32 %v189, %v153
  %v191 = vadd.f32 %v187, %v190
  %s192 = sld [smem:[#allocation3 + $0x23]]
  %v193 = vstv %s192
  %v194 = vmul.f32 %v193, %v177
  %v195 = vadd.f32 %v191, %v194
  %v196 = vxor.u32 %v195, 2147483648
  %v197 = vmul.f32 %v196, 1.442695
  %v198 = vpow.pop %v197
  %v199 = vadd.f32 %v198, 1.0
  %v200 = vrcp.pop %v199
  %v201 = vmul.f32 1.0, %v200
  %202 = vst [vmem:[%s2] sm:$0xff] %v201
  %v203 = vsub.f32 1.0, %v201
  %s204 = scalar_lea.vmem %s2, 8
  %205 = vst [vmem:[%s204] sm:$0xff] %v203
  // Predicated region
  $region6: #{mlp_forward.1} parent=0 // pred_check
    _
  $region7: #{mlp_forward.1} parent=0 // pred_check_branch
    %207 = sbr.rel (0) target = $region9
  $region8: #{mlp_forward.1} parent=0 // pred_region
    _
  $region9: #{mlp_forward.1} parent=0 // pred_fallthru
    _
  // Predicated region
  $region10: #{mlp_forward.1} parent=0 // pred_check
    _
  $region11: #{mlp_forward.1} parent=0 // pred_check_branch
    %209 = sbr.rel (0) target = $region13
  $region12: #{mlp_forward.1} parent=0 // pred_region
    _
  $region13: #{mlp_forward.1} parent=0 // pred_fallthru
    _

</llo_original>
